<compile_context>
chip_gen: v7x
topology: tpu7x:2x2x1
jax: 0.10.0
libtpu: 0.0.40
codegen_flags: <defaults>
</compile_context>

<pallas_src>
import functools

import jax
import jax.numpy as jnp
from jax.experimental import pallas as pl
from jax.experimental.pallas import tpu as pltpu

EPS = 1e-5


def conv_bn_kernel(x_ref, w_ref, gamma_ref, beta_ref, o_ref, y_ref, *, m_true):
    # x_ref:     [C_in, M_pad]  bf16  (columns >= m_true are zero padding)
    # w_ref:     [tn, C_in]     bf16  (streamed per C_out tile)
    # gamma_ref: [tn, 1]        f32
    # beta_ref:  [tn, 1]        f32
    # o_ref:     [tn, M_pad]    bf16
    # y_ref:     [tn, M_pad]    f32 VMEM scratch (explicit staging of the conv result)
    #
    # 1x1 conv == per-pixel matmul: bf16 MXU matmul, f32 accumulation.
    y = jnp.dot(w_ref[...], x_ref[...], preferred_element_type=jnp.float32)
    y_ref[...] = y

    # Single-pass biased batch statistics over the true M pixels (lane axis ->
    # XLU cross-lane reduce, whose slot is otherwise idle here).
    # Zero-padded pixel columns contribute 0 to both sums, so dividing by the
    # true M keeps mean/var exact.  NOTE: this only holds because the conv has
    # no bias and the BN affine is applied *after* the stats.
    inv_m = jnp.float32(1.0 / m_true)
    s1 = jnp.sum(y, axis=-1, keepdims=True)            # [tn, 1]
    s2 = jnp.sum(y * y, axis=-1, keepdims=True)        # [tn, 1]
    mean = s1 * inv_m
    # Clamp: single-pass E[y^2]-E[y]^2 can cancel slightly negative in f32.
    var = jnp.maximum(s2 * inv_m - mean * mean, 0.0)   # biased var (BN training mode)
    inv_std = jax.lax.rsqrt(var + EPS)

    # Fold the affine: o = y * scale + bias.
    scale = gamma_ref[...] * inv_std                   # [tn, 1]
    bias = beta_ref[...] - mean * scale                # [tn, 1]
    o_ref[...] = (y_ref[...] * scale + bias).astype(o_ref.dtype)


def _pick_tile_n(c_out_pad, preferred):
    cands = []
    for tn in (preferred, 512, 256, 128):
        if tn not in cands:
            cands.append(tn)
    # Prefer an even tile count (>= 2) so v7x's two TensorCores each stream
    # half the weight (dimension_semantics="parallel").
    for tn in cands:
        if 128 <= tn <= c_out_pad and c_out_pad % tn == 0 and (c_out_pad // tn) % 2 == 0:
            return tn
    for tn in cands:
        if 128 <= tn <= c_out_pad and c_out_pad % tn == 0:
            return tn
    return 128


def conv2d_bn_forward(x_nchw, weight_oihw, gamma, beta, *, stride=2, tile_n=512):
    """Conv2d(k=1, stride=s, bias=False) + BatchNorm2d (training-mode stats)."""
    n, c_in, h, w = x_nchw.shape
    c_out = weight_oihw.shape[0]

    # 1x1 conv with stride s == spatial subsample, then a per-pixel matmul.
    # TODO(synk): fold the stride-2 subsample into the kernel DMA (pl.ANY +
    # manual strided copy) to drop this remaining XLA slice.
    x_s = x_nchw[:, :, ::stride, ::stride]                       # [N, C_in, Ho, Wo]
    ho, wo = x_s.shape[2], x_s.shape[3]
    m = n * ho * wo
    m_pad = pl.cdiv(m, 128) * 128                                # lane-align pixel axis

    # Channels-first orientation: X[C_in, M].  For N == 1 this is a pure reshape
    # (no transpose); for N > 1 one transpose is unavoidable.
    if n == 1:
        x_mat = x_s.reshape(c_in, m)
    else:
        x_mat = jnp.transpose(x_s, (1, 0, 2, 3)).reshape(c_in, m)
    x_mat = x_mat.astype(jnp.bfloat16)
    if m_pad != m:
        x_mat = jnp.pad(x_mat, ((0, 0), (0, m_pad - m)))         # zero pixel columns

    # Weight OIHW -> [C_out, C_in]: no transpose needed in this orientation.
    w_mat = weight_oihw.reshape(c_out, c_in).astype(jnp.bfloat16)
    gamma2 = gamma.reshape(c_out, 1).astype(jnp.float32)
    beta2 = beta.reshape(c_out, 1).astype(jnp.float32)

    # Pad C_out to a multiple of 128: keeps every tile sublane-aligned and
    # avoids a degenerate 1-tile grid.  Padded channels produce y == 0 and are
    # sliced away after the call.
    c_out_pad = pl.cdiv(c_out, 128) * 128
    if c_out_pad != c_out:
        w_mat = jnp.pad(w_mat, ((0, c_out_pad - c_out), (0, 0)))
        gamma2 = jnp.pad(gamma2, ((0, c_out_pad - c_out), (0, 0)))
        beta2 = jnp.pad(beta2, ((0, c_out_pad - c_out), (0, 0)))

    tn = _pick_tile_n(c_out_pad, tile_n)
    n_tiles = c_out_pad // tn

    kernel = functools.partial(conv_bn_kernel, m_true=float(m))

    # Rough VMEM budget (double-buffered inputs/outputs + f32 staging scratch),
    # with headroom; keeps us well under v7x's 64 MiB physical VMEM.
    vmem_bytes = (2 * c_in * m_pad * 2       # resident x (default double buffer)
                  + 2 * tn * c_in * 2        # streamed weight tile
                  + 2 * tn * m_pad * 2       # output tile
                  + tn * m_pad * 4           # y staging scratch
                  + 4 * tn * 4)              # gamma/beta tiles
    vmem_limit = int(min(max(2 * vmem_bytes, 16 * 1024 * 1024), 100 * 1024 * 1024))

    out_mat = pl.pallas_call(
        kernel,
        out_shape=jax.ShapeDtypeStruct((c_out_pad, m_pad), jnp.bfloat16),
        grid_spec=pltpu.PrefetchScalarGridSpec(
            num_scalar_prefetch=0,
            grid=(n_tiles,),
            in_specs=[
                # Activations resident across all C_out tiles (constant block index).
                # TODO(synk): single-buffer this block (pipeline_mode=pl.Buffered(1))
                # once batch grows enough for the default double buffer to matter.
                pl.BlockSpec((c_in, m_pad), lambda j: (0, 0)),
                # Weight streamed per C_out tile (double-buffered pipeline).
                pl.BlockSpec((tn, c_in), lambda j: (j, 0)),
                pl.BlockSpec((tn, 1), lambda j: (j, 0)),
                pl.BlockSpec((tn, 1), lambda j: (j, 0)),
            ],
            out_specs=pl.BlockSpec((tn, m_pad), lambda j: (j, 0)),
            scratch_shapes=[pltpu.VMEM((tn, m_pad), jnp.float32)],
        ),
        compiler_params=pltpu.CompilerParams(
            # C_out tiles are fully independent -> shard across TCs (v7x megacore).
            dimension_semantics=("parallel",),
            vmem_limit_bytes=vmem_limit,
        ),
        cost_estimate=pl.CostEstimate(
            flops=2 * m * c_in * c_out,
            transcendentals=c_out,
            bytes_accessed=(c_in * m_pad + c_out_pad * c_in + c_out_pad * m_pad) * 2,
        ),
    )(x_mat, w_mat, gamma2, beta2)

    # Drop channel/pixel padding; result is already channels-first.
    out = out_mat[:c_out, :m]
    if n == 1:
        return out.reshape(1, c_out, ho, wo)                     # [1, C_out, Ho, Wo]
    return jnp.transpose(out.reshape(c_out, n, ho, wo), (1, 0, 2, 3))


def _reference(x_nchw, weight_oihw, gamma, beta, *, stride=2):
    # Pure-JAX f32 reference (training-mode BN with biased batch variance).
    x_s = x_nchw[:, :, ::stride, ::stride]
    y = jnp.einsum('nchw,oc->nohw', x_s,
                   weight_oihw.reshape(weight_oihw.shape[0], -1))
    mean = jnp.mean(y, axis=(0, 2, 3), keepdims=True)
    var = jnp.mean((y - mean) ** 2, axis=(0, 2, 3), keepdims=True)
    return (y - mean) * jax.lax.rsqrt(var + EPS) * gamma.reshape(1, -1, 1, 1) \
        + beta.reshape(1, -1, 1, 1)


if __name__ == "__main__":
    # Small shapes consistent with the module (original: 1x1024x14x14 -> 1x2048x7x7).
    N, C_IN, H, W = 1, 128, 14, 14
    C_OUT = 256

    key = jax.random.PRNGKey(0)
    kx, kw, kg, kb = jax.random.split(key, 4)

    x = jax.random.normal(kx, (N, C_IN, H, W), dtype=jnp.float32)
    # Conv2d weight: [C_out, C_in, 1, 1], no bias.
    weight = jax.random.normal(kw, (C_OUT, C_IN, 1, 1), dtype=jnp.float32) * 0.05
    # BatchNorm2d affine params (deterministic synthetic init).
    gamma = 1.0 + 0.1 * jax.random.normal(kg, (C_OUT,), dtype=jnp.float32)
    beta = 0.1 * jax.random.normal(kb, (C_OUT,), dtype=jnp.float32)

    # tile_n=512 falls back to tn=128 at C_OUT=256 -> 2-tile grid (even, >= 2).
    out = conv2d_bn_forward(x, weight, gamma, beta, stride=2, tile_n=512)
    out = jax.block_until_ready(out)

    ref = _reference(x, weight, gamma, beta, stride=2)
    assert out.shape == (N, C_OUT, H // 2, W // 2), out.shape
    # bf16 matmul (f32 accumulate) + bf16 output -> relaxed tolerance vs f32 ref.
    max_err = float(jnp.max(jnp.abs(out.astype(jnp.float32) - ref)))
    assert max_err < 7.5e-2, max_err

    print("KERNEL_OK")
</pallas_src>

<mosaic_0001>
module attributes {stable_mosaic.version = 11 : i64} {
  func.func @conv_bn_kernel(%arg0: i32, %arg1: memref<128x128xbf16, #tpu.memory_space<vmem>>, %arg2: memref<128x128xbf16, #tpu.memory_space<vmem>>, %arg3: memref<128x1xf32, #tpu.memory_space<vmem>>, %arg4: memref<128x1xf32, #tpu.memory_space<vmem>>, %arg5: memref<128x128xbf16, #tpu.memory_space<vmem>>, %arg6: memref<128x128xf32, #tpu.memory_space<vmem>>) attributes {dimension_semantics = [#tpu.dimension_semantics<parallel>], iteration_bounds = array<i64: 2>, scalar_prefetch = 0 : i64, scratch_operands = 1 : i64, tpu.core_type = #tpu.core_type<tc>, window_params = [{pipeline_mode = #tpu.pipeline_mode<synchronous>, transform_indices = @transform_0, window_bounds = array<i64: 128, 128>}, {transform_indices = @transform_1, window_bounds = array<i64: 128, 128>}, {transform_indices = @transform_2, window_bounds = array<i64: 128, 1>}, {transform_indices = @transform_3, window_bounds = array<i64: 128, 1>}, {transform_indices = @transform_4, window_bounds = array<i64: 128, 128>}]} {
    %c0 = arith.constant 0 : index
    %c0_0 = arith.constant 0 : index
    %0 = vector.load %arg2[%c0, %c0_0] : memref<128x128xbf16, #tpu.memory_space<vmem>>, vector<128x128xbf16>
    %c0_1 = arith.constant 0 : index
    %c0_2 = arith.constant 0 : index
    %1 = vector.load %arg1[%c0_1, %c0_2] : memref<128x128xbf16, #tpu.memory_space<vmem>>, vector<128x128xbf16>
    %cst = arith.constant dense<0.000000e+00> : vector<128x128xf32>
    %2 = tpu.matmul %0, %1, %cst {dimension_numbers = #tpu.dot_dimension_numbers<[1], [0], [0], [1], [0, 0, 1, 1], [], []>} : vector<128x128xbf16>, vector<128x128xbf16>, vector<128x128xf32> -> vector<128x128xf32>
    %c0_3 = arith.constant 0 : index
    %c0_4 = arith.constant 0 : index
    %3 = vector.load %arg6[%c0_3, %c0_4] : memref<128x128xf32, #tpu.memory_space<vmem>>, vector<128x128xf32>
    tpu.vector_store %arg6[%c0_3, %c0_4], %2 {strides = array<i32>} : memref<128x128xf32, #tpu.memory_space<vmem>>, vector<128x128xf32>,
    %cst_5 = arith.constant dense<0.000000e+00> : vector<128xf32>
    %4 = vector.multi_reduction <add>, %2, %cst_5 [1] : vector<128x128xf32> to vector<128xf32>
    %5 = vector.shape_cast %4 : vector<128xf32> to vector<128x1xf32>
    %6 = arith.mulf %2, %2 : vector<128x128xf32>
    %cst_6 = arith.constant dense<0.000000e+00> : vector<128xf32>
    %7 = vector.multi_reduction <add>, %6, %cst_6 [1] : vector<128x128xf32> to vector<128xf32>
    %8 = vector.shape_cast %7 : vector<128xf32> to vector<128x1xf32>
    %cst_7 = arith.constant 0.0204081628 : f32
    %9 = vector.broadcast %cst_7 : f32 to vector<128x1xf32>
    %10 = arith.mulf %5, %9 : vector<128x1xf32>
    %cst_8 = arith.constant 0.0204081628 : f32
    %11 = vector.broadcast %cst_8 : f32 to vector<128x1xf32>
    %12 = arith.mulf %8, %11 : vector<128x1xf32>
    %13 = arith.mulf %10, %10 : vector<128x1xf32>
    %14 = arith.subf %12, %13 : vector<128x1xf32>
    %cst_9 = arith.constant 0.000000e+00 : f32
    %15 = vector.broadcast %cst_9 : f32 to vector<128x1xf32>
    %16 = arith.maximumf %14, %15 : vector<128x1xf32>
    %cst_10 = arith.constant 9.99999974E-6 : f32
    %17 = vector.broadcast %cst_10 : f32 to vector<128x1xf32>
    %18 = arith.addf %16, %17 : vector<128x1xf32>
    %19 = math.rsqrt %18 : vector<128x1xf32>
    %c0_11 = arith.constant 0 : index
    %c0_12 = arith.constant 0 : index
    %20 = vector.load %arg3[%c0_11, %c0_12] : memref<128x1xf32, #tpu.memory_space<vmem>>, vector<128x1xf32>
    %21 = arith.mulf %20, %19 : vector<128x1xf32>
    %c0_13 = arith.constant 0 : index
    %c0_14 = arith.constant 0 : index
    %22 = vector.load %arg4[%c0_13, %c0_14] : memref<128x1xf32, #tpu.memory_space<vmem>>, vector<128x1xf32>
    %23 = arith.mulf %10, %21 : vector<128x1xf32>
    %24 = arith.subf %22, %23 : vector<128x1xf32>
    %c0_15 = arith.constant 0 : index
    %c0_16 = arith.constant 0 : index
    %25 = vector.load %arg6[%c0_15, %c0_16] : memref<128x128xf32, #tpu.memory_space<vmem>>, vector<128x128xf32>
    %26 = vector.broadcast %21 : vector<128x1xf32> to vector<128x128xf32>
    %27 = arith.mulf %25, %26 : vector<128x128xf32>
    %28 = vector.broadcast %24 : vector<128x1xf32> to vector<128x128xf32>
    %29 = arith.addf %27, %28 : vector<128x128xf32>
    %30 = arith.truncf %29 : vector<128x128xf32> to vector<128x128xbf16>
    %c0_17 = arith.constant 0 : index
    %c0_18 = arith.constant 0 : index
    %31 = vector.load %arg5[%c0_17, %c0_18] : memref<128x128xbf16, #tpu.memory_space<vmem>>, vector<128x128xbf16>
    tpu.vector_store %arg5[%c0_17, %c0_18], %30 {strides = array<i32>} : memref<128x128xbf16, #tpu.memory_space<vmem>>, vector<128x128xbf16>,
    return
  }
  func.func @transform_0(%arg0: i32) -> (i32, i32) {
    %c0_i32 = arith.constant 0 : i32
    %c0_i32_0 = arith.constant 0 : i32
    %c0_i32_1 = arith.constant 0 : i32
    return %c0_i32, %c0_i32_0 : i32, i32
  }
  func.func @transform_1(%arg0: i32) -> (i32, i32) {
    %c0_i32 = arith.constant 0 : i32
    %c0_i32_0 = arith.constant 0 : i32
    return %arg0, %c0_i32 : i32, i32
  }
  func.func @transform_2(%arg0: i32) -> (i32, i32) {
    %c0_i32 = arith.constant 0 : i32
    %c0_i32_0 = arith.constant 0 : i32
    return %arg0, %c0_i32 : i32, i32
  }
  func.func @transform_3(%arg0: i32) -> (i32, i32) {
    %c0_i32 = arith.constant 0 : i32
    %c0_i32_0 = arith.constant 0 : i32
    return %arg0, %c0_i32 : i32, i32
  }
  func.func @transform_4(%arg0: i32) -> (i32, i32) {
    %c0_i32 = arith.constant 0 : i32
    %c0_i32_0 = arith.constant 0 : i32
    return %arg0, %c0_i32 : i32, i32
  }
}

</mosaic_0001>

<llo_original>
// kernel: tpu_custom_call.1
$region0: #{tpu_custom_call.1}
  #allocation0 [shape = 'u32[]', space=smem, size = 0x4, offset = 0x4, fixed_abs, tag = 'smem constant byte address 0x4 - core index']
  #allocation1 [shape = 'u32[144,128]{1,0:T(1,128)}', space=vmem, size = 0x12000, scoped, tag = 'internal scratch']
  #allocation2 [shape = 'f32[128,128]{1,0:T(8,128)}', space=vmem, size = 0x10000, scoped, tag = 'scratch operand']
  %s0 = inlined_call_operand.vmem [shape: bf16[128,128], index: 0, kind: input, shape index: {}]
  %s1 = inlined_call_operand.vmem [shape: bf16[256,128], index: 1, kind: input, shape index: {}]
  %s2 = inlined_call_operand.vmem [shape: f32[256,1], index: 2, kind: input, shape index: {}]
  %s3 = inlined_call_operand.vmem [shape: f32[256,1], index: 3, kind: input, shape index: {}]
  %s4 = inlined_call_operand.hbm [shape: bf16[256,128], index: 4, kind: output, shape index: {}]
  %s5 = sld [smem:[#allocation0]]
  $region49: #{tpu_custom_call.1} parent=0
    _
  %s7 = ssub.s32 1, %s5
  %s8 = scalar_select 0, %s7, %s5
  $region1: #{tpu_custom_call.1} parent=0
    #allocation3 [shape = 'u8[65536]{0}', space=vmem, size = 0x10000, scoped, tag = 'output window, operand 0']
    #allocation4 [shape = 's32[2]{0}', space=sflag, size = 0x8, scoped, tag = 'scoped memory for tpu_custom_call.1']
    %9 = vsyncpa [#allocation4], 0
    %s10 = scalar_lea.sflag [#allocation4], 1
    %11 = vsyncpa %s10, 0
    loop: start=0, step=1, limit=4
    $region2: #{tpu_custom_call.1} parent=1 // loop_pre_header
      _
    $region3: #{tpu_custom_call.1} parent=1 // loop_header
      %s13 = sphi 0, %s17
      %p14 = scmp.ge.s32.totalorder %s13, 4
      %s21 = sphi 0, %s21
      %s23 = sphi 0, %s21
      %s24 = sphi 0, %s23
      %s38 = sphi 0, %s24
      %s44 = sphi 0, %s46
      %s47 = sphi 0, %s44
      %s48 = sphi 0, %s47
      %s64 = sphi 0, %s48
      %s70 = sphi 0, %s72
      %s73 = sphi 0, %s70
      %s74 = sphi 0, %s73
      %s90 = sphi 0, %s74
      %s96 = sphi 0, %s98
      %s99 = sphi 0, %s96
      %s100 = sphi 0, %s99
      %s116 = sphi 0, %s100
      %s122 = sphi 0, %s124
      %s125 = sphi 0, %s122
      %s126 = sphi 0, %s125
      %s142 = sphi 0, %s126
    $region4: #{tpu_custom_call.1} parent=1 // loop_header_branch
      %16 = sbr.rel (%p14) target = $region8
    $region5: #{tpu_custom_call.1} parent=1 // loop_body
      %s18 = ssub.s32 %s13, 1
      %s19 = ssub.s32 %s13, 2
      %s20 = sadd.s32 %s13, 1
      %s22 = sadd.s32 %s21, 1
      %p25 = scmp.eq.s32.totalorder %s13, 1
      %p26 = scmp.ne.s32.totalorder %s21, %s23
      %p27 = scmp.eq.s32.totalorder %s13, 0
      %p28 = por %p26, %p27
      %p29 = scmp.ne.s32.totalorder %s21, %s23
      %p30 = scmp.eq.s32.totalorder %s18, 1
      %p31 = por %p29, %p30
      %p32 = scmp.ne.s32.totalorder %s23, %s24
      %p33 = scmp.eq.s32.totalorder %s18, 0
      %p34 = por %p32, %p33
      %p35 = scmp.ne.s32.totalorder %s23, %s24
      %p36 = scmp.eq.s32.totalorder %s19, 1
      %p37 = por %p35, %p36
      %p39 = scmp.ne.s32.totalorder %s24, %s38
      %p40 = scmp.eq.s32.totalorder %s19, 0
      %p41 = por %p39, %p40
      %s42 = ssub.s32 %s13, %s20
      %p43 = scmp.eq.s32.totalorder %s42, 0
      %s45 = sadd.s32 %s44, 1
      %s46 = scalar_select %p43, %s44, %s45
      %p49 = pneg %p43
      %p50 = scmp.eq.s32.totalorder %s13, 1
      %p51 = por %p49, %p50
      %p52 = scmp.ne.s32.totalorder %s44, %s47
      %p53 = scmp.eq.s32.totalorder %s13, 0
      %p54 = por %p52, %p53
      %p55 = scmp.ne.s32.totalorder %s44, %s47
      %p56 = scmp.eq.s32.totalorder %s18, 1
      %p57 = por %p55, %p56
      %p58 = scmp.ne.s32.totalorder %s47, %s48
      %p59 = scmp.eq.s32.totalorder %s18, 0
      %p60 = por %p58, %p59
      %p61 = scmp.ne.s32.totalorder %s47, %s48
      %p62 = scmp.eq.s32.totalorder %s19, 1
      %p63 = por %p61, %p62
      %p65 = scmp.ne.s32.totalorder %s48, %s64
      %p66 = scmp.eq.s32.totalorder %s19, 0
      %p67 = por %p65, %p66
      %s68 = ssub.s32 %s13, %s20
      %p69 = scmp.eq.s32.totalorder %s68, 0
      %s71 = sadd.s32 %s70, 1
      %s72 = scalar_select %p69, %s70, %s71
      %p75 = pneg %p69
      %p76 = scmp.eq.s32.totalorder %s13, 1
      %p77 = por %p75, %p76
      %p78 = scmp.ne.s32.totalorder %s70, %s73
      %p79 = scmp.eq.s32.totalorder %s13, 0
      %p80 = por %p78, %p79
      %p81 = scmp.ne.s32.totalorder %s70, %s73
      %p82 = scmp.eq.s32.totalorder %s18, 1
      %p83 = por %p81, %p82
      %p84 = scmp.ne.s32.totalorder %s73, %s74
      %p85 = scmp.eq.s32.totalorder %s18, 0
      %p86 = por %p84, %p85
      %p87 = scmp.ne.s32.totalorder %s73, %s74
      %p88 = scmp.eq.s32.totalorder %s19, 1
      %p89 = por %p87, %p88
      %p91 = scmp.ne.s32.totalorder %s74, %s90
      %p92 = scmp.eq.s32.totalorder %s19, 0
      %p93 = por %p91, %p92
      %s94 = ssub.s32 %s13, %s20
      %p95 = scmp.eq.s32.totalorder %s94, 0
      %s97 = sadd.s32 %s96, 1
      %s98 = scalar_select %p95, %s96, %s97
      %p101 = pneg %p95
      %p102 = scmp.eq.s32.totalorder %s13, 1
      %p103 = por %p101, %p102
      %p104 = scmp.ne.s32.totalorder %s96, %s99
      %p105 = scmp.eq.s32.totalorder %s13, 0
      %p106 = por %p104, %p105
      %p107 = scmp.ne.s32.totalorder %s96, %s99
      %p108 = scmp.eq.s32.totalorder %s18, 1
      %p109 = por %p107, %p108
      %p110 = scmp.ne.s32.totalorder %s99, %s100
      %p111 = scmp.eq.s32.totalorder %s18, 0
      %p112 = por %p110, %p111
      %p113 = scmp.ne.s32.totalorder %s99, %s100
      %p114 = scmp.eq.s32.totalorder %s19, 1
      %p115 = por %p113, %p114
      %p117 = scmp.ne.s32.totalorder %s100, %s116
      %p118 = scmp.eq.s32.totalorder %s19, 0
      %p119 = por %p117, %p118
      %s120 = ssub.s32 %s13, %s20
      %p121 = scmp.eq.s32.totalorder %s120, 0
      %s123 = sadd.s32 %s122, 1
      %s124 = scalar_select %p121, %s122, %s123
      %p127 = pneg %p121
      %p128 = scmp.eq.s32.totalorder %s13, 1
      %p129 = por %p127, %p128
      %p130 = scmp.ne.s32.totalorder %s122, %s125
      %p131 = scmp.eq.s32.totalorder %s13, 0
      %p132 = por %p130, %p131
      %p133 = scmp.ne.s32.totalorder %s122, %s125
      %p134 = scmp.eq.s32.totalorder %s18, 1
      %p135 = por %p133, %p134
      %p136 = scmp.ne.s32.totalorder %s125, %s126
      %p137 = scmp.eq.s32.totalorder %s18, 0
      %p138 = por %p136, %p137
      %p139 = scmp.ne.s32.totalorder %s125, %s126
      %p140 = scmp.eq.s32.totalorder %s19, 1
      %p141 = por %p139, %p140
      %p143 = scmp.ne.s32.totalorder %s126, %s142
      %p144 = scmp.eq.s32.totalorder %s19, 0
      %p145 = por %p143, %p144
      %p146 = scmp.le.s32.totalorder 1, %s13
      %p147 = scmp.lt.s32.totalorder %s13, 3
      %p148 = pnand %p146, %p147
      %p149 = pneg %p148
      // Predicated region
      $region9: #{tpu_custom_call.1} parent=5 // pred_check
        _
      $region10: #{tpu_custom_call.1} parent=5 // pred_check_branch
        %151 = sbr.rel (%p148) target = $region12
      $region11: #{tpu_custom_call.1} parent=5 // pred_region
        %s152 = ssub.s32 %s13, 1
        // Predicated region
        $region13: #{tpu_custom_call.1} parent=11 // pred_check
          %p153 = pneg %p34
        $region14: #{tpu_custom_call.1} parent=11 // pred_check_branch
          %155 = sbr.rel (%p153) target = $region16
        $region15: #{tpu_custom_call.1} parent=11 // pred_region
          _
        $region16: #{tpu_custom_call.1} parent=11 // pred_fallthru
          _
      $region12: #{tpu_custom_call.1} parent=5 // pred_fallthru
        _
      %p156 = scmp.lt.s32.totalorder %s13, 2
      // Predicated region
      $region17: #{tpu_custom_call.1} parent=5 // pred_check
        %p157 = pneg %p156
      $region18: #{tpu_custom_call.1} parent=5 // pred_check_branch
        %159 = sbr.rel (%p157) target = $region20
      $region19: #{tpu_custom_call.1} parent=5 // pred_region
        // Predicated region
        $region21: #{tpu_custom_call.1} parent=19 // pred_check
          %p160 = pneg %p54
        $region22: #{tpu_custom_call.1} parent=19 // pred_check_branch
          %162 = sbr.rel (%p160) target = $region24
        $region23: #{tpu_custom_call.1} parent=19 // pred_region
          %s163 = smul.u32 16, %s13
          %p164 = scmp.lt.s32.totalorder %s163, 31
          %s165 = scalar_select %p164, %s163, 31
          %s166 = smul.addr %s165, 4
          %s167 = scalar_lea.vmem %s1, %s166
          %s168 = smul.u32 16, %s13
        $region24: #{tpu_custom_call.1} parent=19 // pred_fallthru
          _
        // Predicated region
        $region25: #{tpu_custom_call.1} parent=19 // pred_check
          %p169 = pneg %p80
        $region26: #{tpu_custom_call.1} parent=19 // pred_check_branch
          %171 = sbr.rel (%p169) target = $region28
        $region27: #{tpu_custom_call.1} parent=19 // pred_region
          %s172 = smul.u32 16, %s13
          %p173 = scmp.lt.s32.totalorder %s172, 31
          %s174 = scalar_select %p173, %s172, 31
          %s175 = smul.addr %s174, 8
          %s176 = scalar_lea.vmem %s2, %s175
          %s177 = smul.u32 16, %s13
        $region28: #{tpu_custom_call.1} parent=19 // pred_fallthru
          _
        // Predicated region
        $region29: #{tpu_custom_call.1} parent=19 // pred_check
          %p178 = pneg %p106
        $region30: #{tpu_custom_call.1} parent=19 // pred_check_branch
          %180 = sbr.rel (%p178) target = $region32
        $region31: #{tpu_custom_call.1} parent=19 // pred_region
          %s181 = smul.u32 16, %s13
          %p182 = scmp.lt.s32.totalorder %s181, 31
          %s183 = scalar_select %p182, %s181, 31
          %s184 = smul.addr %s183, 8
          %s185 = scalar_lea.vmem %s3, %s184
          %s186 = smul.u32 16, %s13
        $region32: #{tpu_custom_call.1} parent=19 // pred_fallthru
          _
      $region20: #{tpu_custom_call.1} parent=5 // pred_fallthru
        _
      %p187 = scmp.le.s32.totalorder 1, %s13
      %p188 = scmp.lt.s32.totalorder %s13, 3
      %p189 = pnand %p187, %p188
      %p190 = pneg %p189
      // Predicated region
      $region33: #{tpu_custom_call.1} parent=5 // pred_check
        _
      $region34: #{tpu_custom_call.1} parent=5 // pred_check_branch
        %192 = sbr.rel (%p189) target = $region36
      $region35: #{tpu_custom_call.1} parent=5 // pred_region
        %s193 = ssub.s32 %s13, 1
        %p194 = pneg %p34
        %p195 = pneg %p31
        %s196 = smul.u32 16, %s18
        %p197 = scmp.lt.s32.totalorder %s196, 31
        %s198 = scalar_select %p197, %s196, 31
        %s199 = smul.addr %s198, 4
        %s200 = scalar_lea.vmem %s1, %s199
        %p201 = pneg %p60
        %p202 = pneg %p57
        %s203 = smul.u32 16, %s18
        %p204 = scmp.lt.s32.totalorder %s203, 31
        %s205 = scalar_select %p204, %s203, 31
        %s206 = smul.addr %s205, 8
        %s207 = scalar_lea.vmem %s2, %s206
        %p208 = pneg %p86
        %p209 = pneg %p83
        %s210 = smul.u32 16, %s18
        %p211 = scmp.lt.s32.totalorder %s210, 31
        %s212 = scalar_select %p211, %s210, 31
        %s213 = smul.addr %s212, 8
        %s214 = scalar_lea.vmem %s3, %s213
        %p215 = pneg %p112
        %p216 = pneg %p109
        %p217 = pneg %p138
        %p218 = pneg %p135
        %s219 = sand.u32 %s125, 1
        %s220 = scalar_lea.sflag [#allocation4], %s219
        %s221 = sand.u32 %s125, 1
        %s222 = smul.addr %s221, 64
        %s223 = scalar_lea.vmem [#allocation3], %s222
        %s224 = smul.u32 16, %s18
        %p225 = scmp.lt.s32.totalorder %s224, 31
        %s226 = scalar_select %p225, %s224, 31
        %s227 = smul.addr %s226, 4
        %s228 = scalar_lea.vmem %s1, %s227
        %s229 = smul.u32 16, %s18
        %s230 = smul.u32 16, %s18
        %p231 = scmp.lt.s32.totalorder %s230, 31
        %s232 = scalar_select %p231, %s230, 31
        %s233 = smul.addr %s232, 8
        %s234 = scalar_lea.vmem %s2, %s233
        %s235 = smul.u32 16, %s18
        %s236 = smul.u32 16, %s18
        %p237 = scmp.lt.s32.totalorder %s236, 31
        %s238 = scalar_select %p237, %s236, 31
        %s239 = smul.addr %s238, 8
        %s240 = scalar_lea.vmem %s3, %s239
        %s241 = smul.u32 16, %s18
        %s242 = smul.u32 16, %s18
        %v244 = vld [vmem:[%s228] sm:$0xf]
        %v245 = vld [vmem:[%s228 + $0x4] sm:$0xf]
        %v246 = vld [vmem:[%s228 + $0x8] sm:$0xf]
        %v247 = vld [vmem:[%s228 + $0xc] sm:$0xf]
        %v248 = vld [vmem:[%s228 + $0x10] sm:$0xf]
        %v249 = vld [vmem:[%s228 + $0x14] sm:$0xf]
        %v250 = vld [vmem:[%s228 + $0x18] sm:$0xf]
        %v251 = vld [vmem:[%s228 + $0x1c] sm:$0xf]
        %v252 = vld [vmem:[%s228 + $0x20] sm:$0xf]
        %v253 = vld [vmem:[%s228 + $0x24] sm:$0xf]
        %v254 = vld [vmem:[%s228 + $0x28] sm:$0xf]
        %v255 = vld [vmem:[%s228 + $0x2c] sm:$0xf]
        %v256 = vld [vmem:[%s228 + $0x30] sm:$0xf]
        %v257 = vld [vmem:[%s228 + $0x34] sm:$0xf]
        %v258 = vld [vmem:[%s228 + $0x38] sm:$0xf]
        %v259 = vld [vmem:[%s228 + $0x3c] sm:$0xf]
        %v260 = vld [vmem:[%s0] sm:$0xf]
        %v261 = vld [vmem:[%s0 + $0x4] sm:$0xf]
        %v262 = vld [vmem:[%s0 + $0x8] sm:$0xf]
        %v263 = vld [vmem:[%s0 + $0xc] sm:$0xf]
        %v264 = vld [vmem:[%s0 + $0x10] sm:$0xf]
        %v265 = vld [vmem:[%s0 + $0x14] sm:$0xf]
        %v266 = vld [vmem:[%s0 + $0x18] sm:$0xf]
        %v267 = vld [vmem:[%s0 + $0x1c] sm:$0xf]
        %v268 = vld [vmem:[%s0 + $0x20] sm:$0xf]
        %v269 = vld [vmem:[%s0 + $0x24] sm:$0xf]
        %v270 = vld [vmem:[%s0 + $0x28] sm:$0xf]
        %v271 = vld [vmem:[%s0 + $0x2c] sm:$0xf]
        %v272 = vld [vmem:[%s0 + $0x30] sm:$0xf]
        %v273 = vld [vmem:[%s0 + $0x34] sm:$0xf]
        %v274 = vld [vmem:[%s0 + $0x38] sm:$0xf]
        %v275 = vld [vmem:[%s0 + $0x3c] sm:$0xf]
        %v292 = vunpack.c.l.b16 %v244
        %v293 = vunpack.c.l.b16 %v245
        %v294 = vunpack.c.l.b16 %v246
        %v295 = vunpack.c.l.b16 %v247
        %v296 = vunpack.c.l.b16 %v248
        %v297 = vunpack.c.l.b16 %v249
        %v298 = vunpack.c.l.b16 %v250
        %v299 = vunpack.c.l.b16 %v251
        %v300 = vunpack.c.l.b16 %v252
        %v301 = vunpack.c.l.b16 %v253
        %v302 = vunpack.c.l.b16 %v254
        %v303 = vunpack.c.l.b16 %v255
        %v304 = vunpack.c.l.b16 %v256
        %v305 = vunpack.c.l.b16 %v257
        %v306 = vunpack.c.l.b16 %v258
        %v307 = vunpack.c.l.b16 %v259
        %v308 = vpack.c.b16 %v293, %v292
        %v309 = vpack.c.b16 %v295, %v294
        %v310 = vpack.c.b16 %v297, %v296
        %v311 = vpack.c.b16 %v299, %v298
        %v312 = vpack.c.b16 %v301, %v300
        %v313 = vpack.c.b16 %v303, %v302
        %v314 = vpack.c.b16 %v305, %v304
        %v315 = vpack.c.b16 %v307, %v306
        %v340 = vunpack.c.l.b16 %v260
        %v341 = vunpack.c.l.b16 %v261
        %v342 = vunpack.c.l.b16 %v262
        %v343 = vunpack.c.l.b16 %v263
        %v344 = vunpack.c.l.b16 %v264
        %v345 = vunpack.c.l.b16 %v265
        %v346 = vunpack.c.l.b16 %v266
        %v347 = vunpack.c.l.b16 %v267
        %v348 = vunpack.c.l.b16 %v268
        %v349 = vunpack.c.l.b16 %v269
        %v350 = vunpack.c.l.b16 %v270
        %v351 = vunpack.c.l.b16 %v271
        %v352 = vunpack.c.l.b16 %v272
        %v353 = vunpack.c.l.b16 %v273
        %v354 = vunpack.c.l.b16 %v274
        %v355 = vunpack.c.l.b16 %v275
        %v356 = vpack.c.b16 %v341, %v340
        %v357 = vpack.c.b16 %v343, %v342
        %v358 = vpack.c.b16 %v345, %v344
        %v359 = vpack.c.b16 %v347, %v346
        %v360 = vpack.c.b16 %v349, %v348
        %v361 = vpack.c.b16 %v351, %v350
        %v362 = vpack.c.b16 %v353, %v352
        %v363 = vpack.c.b16 %v355, %v354
        %372 = vmatprep.subr.bf16.mxu0 0
        %373 = vmatpush1.bf16.msra.mxu0 %v356
        %374 = vmatprep.subr.bf16.mxu0 0
        %375 = vmatpush1.bf16.msra.mxu0 %v357
        %376 = vmatprep.subr.bf16.mxu0 0
        %377 = vmatpush1.bf16.msra.mxu0 %v358
        %378 = vmatprep.subr.bf16.mxu0 0
        %379 = vmatpush1.bf16.msra.mxu0 %v359
        %380 = vmatprep.subr.bf16.mxu0 0
        %381 = vmatpush1.bf16.msra.mxu0 %v360
        %382 = vmatprep.subr.bf16.mxu0 0
        %383 = vmatpush1.bf16.msra.mxu0 %v361
        %384 = vmatprep.subr.bf16.mxu0 0
        %385 = vmatpush1.bf16.msra.mxu0 %v362
        %386 = vmatprep.subr.bf16.mxu0 0
        %387 = vmatpush1.bf16.msra.mxu0 %v363
        %388 = vmatprep.subr.bf16.mxu0 0
        %389 = vmatpush1.bf16.msra.mxu0 0
        %390 = vmatprep.subr.bf16.mxu0 0
        %391 = vmatpush1.bf16.msra.mxu0 0
        %392 = vmatprep.subr.bf16.mxu0 0
        %393 = vmatpush1.bf16.msra.mxu0 0
        %394 = vmatprep.subr.bf16.mxu0 0
        %395 = vmatpush1.bf16.msra.mxu0 0
        %396 = vmatprep.subr.bf16.mxu0 0
        %397 = vmatpush1.bf16.msra.mxu0 0
        %398 = vmatprep.subr.bf16.mxu0 0
        %399 = vmatpush1.bf16.msra.mxu0 0
        %400 = vmatprep.subr.bf16.mxu0 0
        %401 = vmatpush1.bf16.msra.mxu0 0
        %402 = vmatprep.subr.bf16.mxu0 0
        %403 = vmatpush1.bf16.msra.mxu0 0
        %404 = vmatprep.mubr.bf16.mxu0 0
        %405 = vmatmul.mubr.bf16.gmra.mrb[0].mxu0 %v308
        %v406 = vpop.f32.mrb[0].mxu0
        %v407 = vadd.f32 0.0, %v406
        %v408 = vpop.f32.mrb[0].mxu0
        %v409 = vpop.f32.mrb[0].mxu0
        %v410 = vadd.f32 0.0, %v409
        %v411 = vpop.f32.mrb[0].mxu0
        %412 = vmatprep.mubr.bf16.mxu0 0
        %413 = vmatmul.mubr.bf16.gmra.mrb[0].mxu0 %v309
        %v414 = vpop.f32.mrb[0].mxu0
        %v415 = vadd.f32 0.0, %v414
        %v416 = vpop.f32.mrb[0].mxu0
        %v417 = vpop.f32.mrb[0].mxu0
        %v418 = vadd.f32 0.0, %v417
        %v419 = vpop.f32.mrb[0].mxu0
        %420 = vmatprep.mubr.bf16.mxu0 0
        %421 = vmatmul.mubr.bf16.gmra.mrb[0].mxu0 %v310
        %v422 = vpop.f32.mrb[0].mxu0
        %v423 = vadd.f32 0.0, %v422
        %v424 = vpop.f32.mrb[0].mxu0
        %v425 = vpop.f32.mrb[0].mxu0
        %v426 = vadd.f32 0.0, %v425
        %v427 = vpop.f32.mrb[0].mxu0
        %428 = vmatprep.mubr.bf16.mxu0 0
        %429 = vmatmul.mubr.bf16.gmra.mrb[0].mxu0 %v311
        %v430 = vpop.f32.mrb[0].mxu0
        %v431 = vadd.f32 0.0, %v430
        %v432 = vpop.f32.mrb[0].mxu0
        %v433 = vpop.f32.mrb[0].mxu0
        %v434 = vadd.f32 0.0, %v433
        %v435 = vpop.f32.mrb[0].mxu0
        %436 = vmatprep.mubr.bf16.mxu0 0
        %437 = vmatmul.mubr.bf16.gmra.mrb[0].mxu0 %v312
        %v438 = vpop.f32.mrb[0].mxu0
        %v439 = vadd.f32 0.0, %v438
        %v440 = vpop.f32.mrb[0].mxu0
        %v441 = vpop.f32.mrb[0].mxu0
        %v442 = vadd.f32 0.0, %v441
        %v443 = vpop.f32.mrb[0].mxu0
        %444 = vmatprep.mubr.bf16.mxu0 0
        %445 = vmatmul.mubr.bf16.gmra.mrb[0].mxu0 %v313
        %v446 = vpop.f32.mrb[0].mxu0
        %v447 = vadd.f32 0.0, %v446
        %v448 = vpop.f32.mrb[0].mxu0
        %v449 = vpop.f32.mrb[0].mxu0
        %v450 = vadd.f32 0.0, %v449
        %v451 = vpop.f32.mrb[0].mxu0
        %452 = vmatprep.mubr.bf16.mxu0 0
        %453 = vmatmul.mubr.bf16.gmra.mrb[0].mxu0 %v314
        %v454 = vpop.f32.mrb[0].mxu0
        %v455 = vadd.f32 0.0, %v454
        %v456 = vpop.f32.mrb[0].mxu0
        %v457 = vpop.f32.mrb[0].mxu0
        %v458 = vadd.f32 0.0, %v457
        %v459 = vpop.f32.mrb[0].mxu0
        %460 = vmatprep.mubr.bf16.mxu0 0
        %461 = vmatmul.mubr.bf16.gmra.mrb[0].mxu0 %v315
        %v462 = vpop.f32.mrb[0].mxu0
        %v463 = vadd.f32 0.0, %v462
        %v464 = vpop.f32.mrb[0].mxu0
        %v465 = vpop.f32.mrb[0].mxu0
        %v466 = vadd.f32 0.0, %v465
        %v467 = vpop.f32.mrb[0].mxu0
        %468 = vdwg.mxu0
        %469 = vst [vmem:[#allocation2] sm:$0xff] %v407
        %470 = vst [vmem:[#allocation2 + $0x8] sm:$0xff] %v410
        %471 = vst [vmem:[#allocation2 + $0x10] sm:$0xff] %v415
        %472 = vst [vmem:[#allocation2 + $0x18] sm:$0xff] %v418
        %473 = vst [vmem:[#allocation2 + $0x20] sm:$0xff] %v423
        %474 = vst [vmem:[#allocation2 + $0x28] sm:$0xff] %v426
        %475 = vst [vmem:[#allocation2 + $0x30] sm:$0xff] %v431
        %476 = vst [vmem:[#allocation2 + $0x38] sm:$0xff] %v434
        %477 = vst [vmem:[#allocation2 + $0x40] sm:$0xff] %v439
        %478 = vst [vmem:[#allocation2 + $0x48] sm:$0xff] %v442
        %479 = vst [vmem:[#allocation2 + $0x50] sm:$0xff] %v447
        %480 = vst [vmem:[#allocation2 + $0x58] sm:$0xff] %v450
        %481 = vst [vmem:[#allocation2 + $0x60] sm:$0xff] %v455
        %482 = vst [vmem:[#allocation2 + $0x68] sm:$0xff] %v458
        %483 = vst [vmem:[#allocation2 + $0x70] sm:$0xff] %v463
        %484 = vst [vmem:[#allocation2 + $0x78] sm:$0xff] %v466
        %485 = vadd.xlane.f32.xlu0 %v407
        %v486 = vpop.xlane.xlu0 %485
        %487 = vadd.xlane.f32.xlu0 %v410
        %v488 = vpop.xlane.xlu0 %487
        %489 = vadd.xlane.f32.xlu0 %v415
        %v490 = vpop.xlane.xlu0 %489
        %491 = vadd.xlane.f32.xlu0 %v418
        %v492 = vpop.xlane.xlu0 %491
        %493 = vadd.xlane.f32.xlu0 %v423
        %v494 = vpop.xlane.xlu0 %493
        %495 = vadd.xlane.f32.xlu0 %v426
        %v496 = vpop.xlane.xlu0 %495
        %497 = vadd.xlane.f32.xlu0 %v431
        %v498 = vpop.xlane.xlu0 %497
        %499 = vadd.xlane.f32.xlu0 %v434
        %v500 = vpop.xlane.xlu0 %499
        %501 = vadd.xlane.f32.xlu0 %v439
        %v502 = vpop.xlane.xlu0 %501
        %503 = vadd.xlane.f32.xlu0 %v442
        %v504 = vpop.xlane.xlu0 %503
        %505 = vadd.xlane.f32.xlu0 %v447
        %v506 = vpop.xlane.xlu0 %505
        %507 = vadd.xlane.f32.xlu0 %v450
        %v508 = vpop.xlane.xlu0 %507
        %509 = vadd.xlane.f32.xlu0 %v455
        %v510 = vpop.xlane.xlu0 %509
        %511 = vadd.xlane.f32.xlu0 %v458
        %v512 = vpop.xlane.xlu0 %511
        %513 = vadd.xlane.f32.xlu0 %v463
        %v514 = vpop.xlane.xlu0 %513
        %515 = vadd.xlane.f32.xlu0 %v466
        %v516 = vpop.xlane.xlu0 %515
        %v517 = vmul.f32 %v407, %v407
        %v518 = vmul.f32 %v410, %v410
        %v519 = vmul.f32 %v415, %v415
        %v520 = vmul.f32 %v418, %v418
        %v521 = vmul.f32 %v423, %v423
        %v522 = vmul.f32 %v426, %v426
        %v523 = vmul.f32 %v431, %v431
        %v524 = vmul.f32 %v434, %v434
        %v525 = vmul.f32 %v439, %v439
        %v526 = vmul.f32 %v442, %v442
        %v527 = vmul.f32 %v447, %v447
        %v528 = vmul.f32 %v450, %v450
        %v529 = vmul.f32 %v455, %v455
        %v530 = vmul.f32 %v458, %v458
        %v531 = vmul.f32 %v463, %v463
        %v532 = vmul.f32 %v466, %v466
        %533 = vadd.xlane.f32.xlu0 %v517
        %v534 = vpop.xlane.xlu0 %533
        %535 = vadd.xlane.f32.xlu0 %v518
        %v536 = vpop.xlane.xlu0 %535
        %537 = vadd.xlane.f32.xlu0 %v519
        %v538 = vpop.xlane.xlu0 %537
        %539 = vadd.xlane.f32.xlu0 %v520
        %v540 = vpop.xlane.xlu0 %539
        %541 = vadd.xlane.f32.xlu0 %v521
        %v542 = vpop.xlane.xlu0 %541
        %543 = vadd.xlane.f32.xlu0 %v522
        %v544 = vpop.xlane.xlu0 %543
        %545 = vadd.xlane.f32.xlu0 %v523
        %v546 = vpop.xlane.xlu0 %545
        %547 = vadd.xlane.f32.xlu0 %v524
        %v548 = vpop.xlane.xlu0 %547
        %549 = vadd.xlane.f32.xlu0 %v525
        %v550 = vpop.xlane.xlu0 %549
        %551 = vadd.xlane.f32.xlu0 %v526
        %v552 = vpop.xlane.xlu0 %551
        %553 = vadd.xlane.f32.xlu0 %v527
        %v554 = vpop.xlane.xlu0 %553
        %555 = vadd.xlane.f32.xlu0 %v528
        %v556 = vpop.xlane.xlu0 %555
        %557 = vadd.xlane.f32.xlu0 %v529
        %v558 = vpop.xlane.xlu0 %557
        %559 = vadd.xlane.f32.xlu0 %v530
        %v560 = vpop.xlane.xlu0 %559
        %561 = vadd.xlane.f32.xlu0 %v531
        %v562 = vpop.xlane.xlu0 %561
        %563 = vadd.xlane.f32.xlu0 %v532
        %v564 = vpop.xlane.xlu0 %563
        %v565 = vmul.f32 %v486, 0.020408163
        %v566 = vmul.f32 %v488, 0.020408163
        %v567 = vmul.f32 %v490, 0.020408163
        %v568 = vmul.f32 %v492, 0.020408163
        %v569 = vmul.f32 %v494, 0.020408163
        %v570 = vmul.f32 %v496, 0.020408163
        %v571 = vmul.f32 %v498, 0.020408163
        %v572 = vmul.f32 %v500, 0.020408163
        %v573 = vmul.f32 %v502, 0.020408163
        %v574 = vmul.f32 %v504, 0.020408163
        %v575 = vmul.f32 %v506, 0.020408163
        %v576 = vmul.f32 %v508, 0.020408163
        %v577 = vmul.f32 %v510, 0.020408163
        %v578 = vmul.f32 %v512, 0.020408163
        %v579 = vmul.f32 %v514, 0.020408163
        %v580 = vmul.f32 %v516, 0.020408163
        %v581 = vmul.f32 %v534, 0.020408163
        %v582 = vmul.f32 %v536, 0.020408163
        %v583 = vmul.f32 %v538, 0.020408163
        %v584 = vmul.f32 %v540, 0.020408163
        %v585 = vmul.f32 %v542, 0.020408163
        %v586 = vmul.f32 %v544, 0.020408163
        %v587 = vmul.f32 %v546, 0.020408163
        %v588 = vmul.f32 %v548, 0.020408163
        %v589 = vmul.f32 %v550, 0.020408163
        %v590 = vmul.f32 %v552, 0.020408163
        %v591 = vmul.f32 %v554, 0.020408163
        %v592 = vmul.f32 %v556, 0.020408163
        %v593 = vmul.f32 %v558, 0.020408163
        %v594 = vmul.f32 %v560, 0.020408163
        %v595 = vmul.f32 %v562, 0.020408163
        %v596 = vmul.f32 %v564, 0.020408163
        %v597 = vmul.f32 %v565, %v565
        %v598 = vmul.f32 %v566, %v566
        %v599 = vmul.f32 %v567, %v567
        %v600 = vmul.f32 %v568, %v568
        %v601 = vmul.f32 %v569, %v569
        %v602 = vmul.f32 %v570, %v570
        %v603 = vmul.f32 %v571, %v571
        %v604 = vmul.f32 %v572, %v572
        %v605 = vmul.f32 %v573, %v573
        %v606 = vmul.f32 %v574, %v574
        %v607 = vmul.f32 %v575, %v575
        %v608 = vmul.f32 %v576, %v576
        %v609 = vmul.f32 %v577, %v577
        %v610 = vmul.f32 %v578, %v578
        %v611 = vmul.f32 %v579, %v579
        %v612 = vmul.f32 %v580, %v580
        %v613 = vsub.f32 %v581, %v597
        %v614 = vsub.f32 %v582, %v598
        %v615 = vsub.f32 %v583, %v599
        %v616 = vsub.f32 %v584, %v600
        %v617 = vsub.f32 %v585, %v601
        %v618 = vsub.f32 %v586, %v602
        %v619 = vsub.f32 %v587, %v603
        %v620 = vsub.f32 %v588, %v604
        %v621 = vsub.f32 %v589, %v605
        %v622 = vsub.f32 %v590, %v606
        %v623 = vsub.f32 %v591, %v607
        %v624 = vsub.f32 %v592, %v608
        %v625 = vsub.f32 %v593, %v609
        %v626 = vsub.f32 %v594, %v610
        %v627 = vsub.f32 %v595, %v611
        %v628 = vsub.f32 %v596, %v612
        %v629 = vmax.f32 %v613, 0.0
        %v630 = vmax.f32 %v614, 0.0
        %v631 = vmax.f32 %v615, 0.0
        %v632 = vmax.f32 %v616, 0.0
        %v633 = vmax.f32 %v617, 0.0
        %v634 = vmax.f32 %v618, 0.0
        %v635 = vmax.f32 %v619, 0.0
        %v636 = vmax.f32 %v620, 0.0
        %v637 = vmax.f32 %v621, 0.0
        %v638 = vmax.f32 %v622, 0.0
        %v639 = vmax.f32 %v623, 0.0
        %v640 = vmax.f32 %v624, 0.0
        %v641 = vmax.f32 %v625, 0.0
        %v642 = vmax.f32 %v626, 0.0
        %v643 = vmax.f32 %v627, 0.0
        %v644 = vmax.f32 %v628, 0.0
        %v645 = vadd.f32 %v629, 1e-05
        %v646 = vadd.f32 %v630, 1e-05
        %v647 = vadd.f32 %v631, 1e-05
        %v648 = vadd.f32 %v632, 1e-05
        %v649 = vadd.f32 %v633, 1e-05
        %v650 = vadd.f32 %v634, 1e-05
        %v651 = vadd.f32 %v635, 1e-05
        %v652 = vadd.f32 %v636, 1e-05
        %v653 = vadd.f32 %v637, 1e-05
        %v654 = vadd.f32 %v638, 1e-05
        %v655 = vadd.f32 %v639, 1e-05
        %v656 = vadd.f32 %v640, 1e-05
        %v657 = vadd.f32 %v641, 1e-05
        %v658 = vadd.f32 %v642, 1e-05
        %v659 = vadd.f32 %v643, 1e-05
        %v660 = vadd.f32 %v644, 1e-05
        %v661 = vrsqrt.pop %v645
        %v662 = vrsqrt.pop %v646
        %v663 = vrsqrt.pop %v647
        %v664 = vrsqrt.pop %v648
        %v665 = vrsqrt.pop %v649
        %v666 = vrsqrt.pop %v650
        %v667 = vrsqrt.pop %v651
        %v668 = vrsqrt.pop %v652
        %v669 = vrsqrt.pop %v653
        %v670 = vrsqrt.pop %v654
        %v671 = vrsqrt.pop %v655
        %v672 = vrsqrt.pop %v656
        %v673 = vrsqrt.pop %v657
        %v674 = vrsqrt.pop %v658
        %v675 = vrsqrt.pop %v659
        %v676 = vrsqrt.pop %v660
        %v677 = vld [vmem:[%s234] sm:$0xff]
        %v678 = vld [vmem:[%s234 + $0x8] sm:$0xff]
        %v679 = vld [vmem:[%s234 + $0x10] sm:$0xff]
        %v680 = vld [vmem:[%s234 + $0x18] sm:$0xff]
        %v681 = vld [vmem:[%s234 + $0x20] sm:$0xff]
        %v682 = vld [vmem:[%s234 + $0x28] sm:$0xff]
        %v683 = vld [vmem:[%s234 + $0x30] sm:$0xff]
        %v684 = vld [vmem:[%s234 + $0x38] sm:$0xff]
        %v685 = vld [vmem:[%s234 + $0x40] sm:$0xff]
        %v686 = vld [vmem:[%s234 + $0x48] sm:$0xff]
        %v687 = vld [vmem:[%s234 + $0x50] sm:$0xff]
        %v688 = vld [vmem:[%s234 + $0x58] sm:$0xff]
        %v689 = vld [vmem:[%s234 + $0x60] sm:$0xff]
        %v690 = vld [vmem:[%s234 + $0x68] sm:$0xff]
        %v691 = vld [vmem:[%s234 + $0x70] sm:$0xff]
        %v692 = vld [vmem:[%s234 + $0x78] sm:$0xff]
        %v693 = vmul.f32 %v677, %v661
        %v694 = vmul.f32 %v678, %v662
        %v695 = vmul.f32 %v679, %v663
        %v696 = vmul.f32 %v680, %v664
        %v697 = vmul.f32 %v681, %v665
        %v698 = vmul.f32 %v682, %v666
        %v699 = vmul.f32 %v683, %v667
        %v700 = vmul.f32 %v684, %v668
        %v701 = vmul.f32 %v685, %v669
        %v702 = vmul.f32 %v686, %v670
        %v703 = vmul.f32 %v687, %v671
        %v704 = vmul.f32 %v688, %v672
        %v705 = vmul.f32 %v689, %v673
        %v706 = vmul.f32 %v690, %v674
        %v707 = vmul.f32 %v691, %v675
        %v708 = vmul.f32 %v692, %v676
        %v709 = vld [vmem:[%s240] sm:$0xff]
        %v710 = vld [vmem:[%s240 + $0x8] sm:$0xff]
        %v711 = vld [vmem:[%s240 + $0x10] sm:$0xff]
        %v712 = vld [vmem:[%s240 + $0x18] sm:$0xff]
        %v713 = vld [vmem:[%s240 + $0x20] sm:$0xff]
        %v714 = vld [vmem:[%s240 + $0x28] sm:$0xff]
        %v715 = vld [vmem:[%s240 + $0x30] sm:$0xff]
        %v716 = vld [vmem:[%s240 + $0x38] sm:$0xff]
        %v717 = vld [vmem:[%s240 + $0x40] sm:$0xff]
        %v718 = vld [vmem:[%s240 + $0x48] sm:$0xff]
        %v719 = vld [vmem:[%s240 + $0x50] sm:$0xff]
        %v720 = vld [vmem:[%s240 + $0x58] sm:$0xff]
        %v721 = vld [vmem:[%s240 + $0x60] sm:$0xff]
        %v722 = vld [vmem:[%s240 + $0x68] sm:$0xff]
        %v723 = vld [vmem:[%s240 + $0x70] sm:$0xff]
        %v724 = vld [vmem:[%s240 + $0x78] sm:$0xff]
        %v725 = vmul.f32 %v565, %v693
        %v726 = vmul.f32 %v566, %v694
        %v727 = vmul.f32 %v567, %v695
        %v728 = vmul.f32 %v568, %v696
        %v729 = vmul.f32 %v569, %v697
        %v730 = vmul.f32 %v570, %v698
        %v731 = vmul.f32 %v571, %v699
        %v732 = vmul.f32 %v572, %v700
        %v733 = vmul.f32 %v573, %v701
        %v734 = vmul.f32 %v574, %v702
        %v735 = vmul.f32 %v575, %v703
        %v736 = vmul.f32 %v576, %v704
        %v737 = vmul.f32 %v577, %v705
        %v738 = vmul.f32 %v578, %v706
        %v739 = vmul.f32 %v579, %v707
        %v740 = vmul.f32 %v580, %v708
        %v741 = vsub.f32 %v709, %v725
        %v742 = vsub.f32 %v710, %v726
        %v743 = vsub.f32 %v711, %v727
        %v744 = vsub.f32 %v712, %v728
        %v745 = vsub.f32 %v713, %v729
        %v746 = vsub.f32 %v714, %v730
        %v747 = vsub.f32 %v715, %v731
        %v748 = vsub.f32 %v716, %v732
        %v749 = vsub.f32 %v717, %v733
        %v750 = vsub.f32 %v718, %v734
        %v751 = vsub.f32 %v719, %v735
        %v752 = vsub.f32 %v720, %v736
        %v753 = vsub.f32 %v721, %v737
        %v754 = vsub.f32 %v722, %v738
        %v755 = vsub.f32 %v723, %v739
        %v756 = vsub.f32 %v724, %v740
        %v757 = vld [vmem:[#allocation2] sm:$0xff]
        %v758 = vld [vmem:[#allocation2 + $0x8] sm:$0xff]
        %v759 = vld [vmem:[#allocation2 + $0x10] sm:$0xff]
        %v760 = vld [vmem:[#allocation2 + $0x18] sm:$0xff]
        %v761 = vld [vmem:[#allocation2 + $0x20] sm:$0xff]
        %v762 = vld [vmem:[#allocation2 + $0x28] sm:$0xff]
        %v763 = vld [vmem:[#allocation2 + $0x30] sm:$0xff]
        %v764 = vld [vmem:[#allocation2 + $0x38] sm:$0xff]
        %v765 = vld [vmem:[#allocation2 + $0x40] sm:$0xff]
        %v766 = vld [vmem:[#allocation2 + $0x48] sm:$0xff]
        %v767 = vld [vmem:[#allocation2 + $0x50] sm:$0xff]
        %v768 = vld [vmem:[#allocation2 + $0x58] sm:$0xff]
        %v769 = vld [vmem:[#allocation2 + $0x60] sm:$0xff]
        %v770 = vld [vmem:[#allocation2 + $0x68] sm:$0xff]
        %v771 = vld [vmem:[#allocation2 + $0x70] sm:$0xff]
        %v772 = vld [vmem:[#allocation2 + $0x78] sm:$0xff]
        %774 = vset.pattern.permute.xlu0 0
        %775 = vperm.xlu0 %774, %v693
        %v776 = vpop.permute.xlu0 %775
        %779 = vset.pattern.permute.xlu0 0
        %780 = vperm.xlu0 %779, %v694
        %v781 = vpop.permute.xlu0 %780
        %784 = vset.pattern.permute.xlu0 0
        %785 = vperm.xlu0 %784, %v695
        %v786 = vpop.permute.xlu0 %785
        %789 = vset.pattern.permute.xlu0 0
        %790 = vperm.xlu0 %789, %v696
        %v791 = vpop.permute.xlu0 %790
        %794 = vset.pattern.permute.xlu0 0
        %795 = vperm.xlu0 %794, %v697
        %v796 = vpop.permute.xlu0 %795
        %799 = vset.pattern.permute.xlu0 0
        %800 = vperm.xlu0 %799, %v698
        %v801 = vpop.permute.xlu0 %800
        %804 = vset.pattern.permute.xlu0 0
        %805 = vperm.xlu0 %804, %v699
        %v806 = vpop.permute.xlu0 %805
        %809 = vset.pattern.permute.xlu0 0
        %810 = vperm.xlu0 %809, %v700
        %v811 = vpop.permute.xlu0 %810
        %814 = vset.pattern.permute.xlu0 0
        %815 = vperm.xlu0 %814, %v701
        %v816 = vpop.permute.xlu0 %815
        %819 = vset.pattern.permute.xlu0 0
        %820 = vperm.xlu0 %819, %v702
        %v821 = vpop.permute.xlu0 %820
        %824 = vset.pattern.permute.xlu0 0
        %825 = vperm.xlu0 %824, %v703
        %v826 = vpop.permute.xlu0 %825
        %829 = vset.pattern.permute.xlu0 0
        %830 = vperm.xlu0 %829, %v704
        %v831 = vpop.permute.xlu0 %830
        %834 = vset.pattern.permute.xlu0 0
        %835 = vperm.xlu0 %834, %v705
        %v836 = vpop.permute.xlu0 %835
        %839 = vset.pattern.permute.xlu0 0
        %840 = vperm.xlu0 %839, %v706
        %v841 = vpop.permute.xlu0 %840
        %844 = vset.pattern.permute.xlu0 0
        %845 = vperm.xlu0 %844, %v707
        %v846 = vpop.permute.xlu0 %845
        %849 = vset.pattern.permute.xlu0 0
        %850 = vperm.xlu0 %849, %v708
        %v851 = vpop.permute.xlu0 %850
        %v853 = vmul.f32 %v757, %v776
        %v854 = vmul.f32 %v758, %v781
        %v855 = vmul.f32 %v759, %v786
        %v856 = vmul.f32 %v760, %v791
        %v857 = vmul.f32 %v761, %v796
        %v858 = vmul.f32 %v762, %v801
        %v859 = vmul.f32 %v763, %v806
        %v860 = vmul.f32 %v764, %v811
        %v861 = vmul.f32 %v765, %v816
        %v862 = vmul.f32 %v766, %v821
        %v863 = vmul.f32 %v767, %v826
        %v864 = vmul.f32 %v768, %v831
        %v865 = vmul.f32 %v769, %v836
        %v866 = vmul.f32 %v770, %v841
        %v867 = vmul.f32 %v771, %v846
        %v868 = vmul.f32 %v772, %v851
        %870 = vset.pattern.permute.xlu0 0
        %871 = vperm.xlu0 %870, %v741
        %v872 = vpop.permute.xlu0 %871
        %875 = vset.pattern.permute.xlu0 0
        %876 = vperm.xlu0 %875, %v742
        %v877 = vpop.permute.xlu0 %876
        %880 = vset.pattern.permute.xlu0 0
        %881 = vperm.xlu0 %880, %v743
        %v882 = vpop.permute.xlu0 %881
        %885 = vset.pattern.permute.xlu0 0
        %886 = vperm.xlu0 %885, %v744
        %v887 = vpop.permute.xlu0 %886
        %890 = vset.pattern.permute.xlu0 0
        %891 = vperm.xlu0 %890, %v745
        %v892 = vpop.permute.xlu0 %891
        %895 = vset.pattern.permute.xlu0 0
        %896 = vperm.xlu0 %895, %v746
        %v897 = vpop.permute.xlu0 %896
        %900 = vset.pattern.permute.xlu0 0
        %901 = vperm.xlu0 %900, %v747
        %v902 = vpop.permute.xlu0 %901
        %905 = vset.pattern.permute.xlu0 0
        %906 = vperm.xlu0 %905, %v748
        %v907 = vpop.permute.xlu0 %906
        %910 = vset.pattern.permute.xlu0 0
        %911 = vperm.xlu0 %910, %v749
        %v912 = vpop.permute.xlu0 %911
        %915 = vset.pattern.permute.xlu0 0
        %916 = vperm.xlu0 %915, %v750
        %v917 = vpop.permute.xlu0 %916
        %920 = vset.pattern.permute.xlu0 0
        %921 = vperm.xlu0 %920, %v751
        %v922 = vpop.permute.xlu0 %921
        %925 = vset.pattern.permute.xlu0 0
        %926 = vperm.xlu0 %925, %v752
        %v927 = vpop.permute.xlu0 %926
        %930 = vset.pattern.permute.xlu0 0
        %931 = vperm.xlu0 %930, %v753
        %v932 = vpop.permute.xlu0 %931
        %935 = vset.pattern.permute.xlu0 0
        %936 = vperm.xlu0 %935, %v754
        %v937 = vpop.permute.xlu0 %936
        %940 = vset.pattern.permute.xlu0 0
        %941 = vperm.xlu0 %940, %v755
        %v942 = vpop.permute.xlu0 %941
        %945 = vset.pattern.permute.xlu0 0
        %946 = vperm.xlu0 %945, %v756
        %v947 = vpop.permute.xlu0 %946
        %v949 = vadd.f32 %v853, %v872
        %v950 = vadd.f32 %v854, %v877
        %v951 = vadd.f32 %v855, %v882
        %v952 = vadd.f32 %v856, %v887
        %v953 = vadd.f32 %v857, %v892
        %v954 = vadd.f32 %v858, %v897
        %v955 = vadd.f32 %v859, %v902
        %v956 = vadd.f32 %v860, %v907
        %v957 = vadd.f32 %v861, %v912
        %v958 = vadd.f32 %v862, %v917
        %v959 = vadd.f32 %v863, %v922
        %v960 = vadd.f32 %v864, %v927
        %v961 = vadd.f32 %v865, %v932
        %v962 = vadd.f32 %v866, %v937
        %v963 = vadd.f32 %v867, %v942
        %v964 = vadd.f32 %v868, %v947
        %v965 = vpack.c.bf16 %v950, %v949
        %v966 = vpack.c.bf16 %v952, %v951
        %v967 = vpack.c.bf16 %v954, %v953
        %v968 = vpack.c.bf16 %v956, %v955
        %v969 = vpack.c.bf16 %v958, %v957
        %v970 = vpack.c.bf16 %v960, %v959
        %v971 = vpack.c.bf16 %v962, %v961
        %v972 = vpack.c.bf16 %v964, %v963
        %v981 = vunpack.c.l.b16 %v965
        %v982 = vunpack.c.h.b16 %v965
        %v983 = vunpack.c.l.b16 %v966
        %v984 = vunpack.c.h.b16 %v966
        %v985 = vunpack.c.l.b16 %v967
        %v986 = vunpack.c.h.b16 %v967
        %v987 = vunpack.c.l.b16 %v968
        %v988 = vunpack.c.h.b16 %v968
        %v989 = vunpack.c.l.b16 %v969
        %v990 = vunpack.c.h.b16 %v969
        %v991 = vunpack.c.l.b16 %v970
        %v992 = vunpack.c.h.b16 %v970
        %v993 = vunpack.c.l.b16 %v971
        %v994 = vunpack.c.h.b16 %v971
        %v995 = vunpack.c.l.b16 %v972
        %v996 = vunpack.c.h.b16 %v972
        %v997 = vpack.c.b16 %v981, %v981
        %v998 = vpack.c.b16 %v982, %v982
        %v999 = vpack.c.b16 %v983, %v983
        %v1000 = vpack.c.b16 %v984, %v984
        %v1001 = vpack.c.b16 %v985, %v985
        %v1002 = vpack.c.b16 %v986, %v986
        %v1003 = vpack.c.b16 %v987, %v987
        %v1004 = vpack.c.b16 %v988, %v988
        %v1005 = vpack.c.b16 %v989, %v989
        %v1006 = vpack.c.b16 %v990, %v990
        %v1007 = vpack.c.b16 %v991, %v991
        %v1008 = vpack.c.b16 %v992, %v992
        %v1009 = vpack.c.b16 %v993, %v993
        %v1010 = vpack.c.b16 %v994, %v994
        %v1011 = vpack.c.b16 %v995, %v995
        %v1012 = vpack.c.b16 %v996, %v996
        %1029 = vst [vmem:[%s223] sm:$0xf] %v997
        %1030 = vst [vmem:[%s223 + $0x4] sm:$0xf] %v998
        %1031 = vst [vmem:[%s223 + $0x8] sm:$0xf] %v999
        %1032 = vst [vmem:[%s223 + $0xc] sm:$0xf] %v1000
        %1033 = vst [vmem:[%s223 + $0x10] sm:$0xf] %v1001
        %1034 = vst [vmem:[%s223 + $0x14] sm:$0xf] %v1002
        %1035 = vst [vmem:[%s223 + $0x18] sm:$0xf] %v1003
        %1036 = vst [vmem:[%s223 + $0x1c] sm:$0xf] %v1004
        %1037 = vst [vmem:[%s223 + $0x20] sm:$0xf] %v1005
        %1038 = vst [vmem:[%s223 + $0x24] sm:$0xf] %v1006
        %1039 = vst [vmem:[%s223 + $0x28] sm:$0xf] %v1007
        %1040 = vst [vmem:[%s223 + $0x2c] sm:$0xf] %v1008
        %1041 = vst [vmem:[%s223 + $0x30] sm:$0xf] %v1009
        %1042 = vst [vmem:[%s223 + $0x34] sm:$0xf] %v1010
        %1043 = vst [vmem:[%s223 + $0x38] sm:$0xf] %v1011
        %1044 = vst [vmem:[%s223 + $0x3c] sm:$0xf] %v1012
        %s1045 = sand.u32 %s125, 1
        %s1046 = scalar_lea.sflag [#allocation4], %s1045
        %s1047 = sand.u32 %s125, 1
        %s1048 = smul.addr %s1047, 64
        %s1049 = scalar_lea.vmem [#allocation3], %s1048
        // Predicated region
        $region37: #{tpu_custom_call.1} parent=35 // pred_check
          %p1050 = pneg %p135
        $region38: #{tpu_custom_call.1} parent=35 // pred_check_branch
          %1052 = sbr.rel (%p1050) target = $region40
        $region39: #{tpu_custom_call.1} parent=35 // pred_region
          %s1053 = smul.u32 16, %s18
          %s1055 = ssub.s32 1024, 1024
          %1056 = vsyncadd %s1046, %s1055
          %s1057 = smul.addr %s1053, 64
          %s1058 = scalar_lea.hbm %s4, %s1057
          %s1059 = sshll.u32 %s1049, 4
          %s1060 = int_to_ptr.vmem [resolvable:$true] %s1059
          %1065 = dma.vmem_to_hbm [thread:$0]  %s1060, 1024, %s1058, %s1046, 64, 64, 4
        $region40: #{tpu_custom_call.1} parent=35 // pred_fallthru
          _
      $region36: #{tpu_custom_call.1} parent=5 // pred_fallthru
        _
      %p1066 = scmp.le.s32.totalorder 2, %s13
      // Predicated region
      $region41: #{tpu_custom_call.1} parent=5 // pred_check
        %p1067 = pneg %p1066
      $region42: #{tpu_custom_call.1} parent=5 // pred_check_branch
        %1069 = sbr.rel (%p1067) target = $region44
      $region43: #{tpu_custom_call.1} parent=5 // pred_region
        %s1070 = ssub.s32 %s13, 2
        // Predicated region
        $region45: #{tpu_custom_call.1} parent=43 // pred_check
          %p1071 = pneg %p141
        $region46: #{tpu_custom_call.1} parent=43 // pred_check_branch
          %1073 = sbr.rel (%p1071) target = $region48
        $region47: #{tpu_custom_call.1} parent=43 // pred_region
          %s1074 = sand.u32 %s126, 1
          %s1075 = scalar_lea.sflag [#allocation4], %s1074
          %s1076 = sand.u32 %s126, 1
          %s1077 = smul.addr %s1076, 64
          %s1078 = scalar_lea.vmem [#allocation3], %s1077
          %1079 = dma.done %s1075, 1024
        $region48: #{tpu_custom_call.1} parent=43 // pred_fallthru
          _
      $region44: #{tpu_custom_call.1} parent=5 // pred_fallthru
        _
    $region6: #{tpu_custom_call.1} parent=1 // loop_footer
      %s17 = sadd.s32 1, %s13
    $region7: #{tpu_custom_call.1} parent=1 // loop_footer_branch
      %12 = sbr.rel target = $region3
    $region8: #{tpu_custom_call.1} parent=1 // loop_exit
      _
    %1080 = vsyncpa [#allocation4], 1
    %s1081 = scalar_lea.sflag [#allocation4], 1
    %1082 = vsyncpa %s1081, 1

</llo_original>
